<compile_context>
chip_gen: v7x
topology: tpu7x:2x2x1
jax: 0.10.0
libtpu: 0.0.40
codegen_flags: <defaults>
</compile_context>

<pallas_src>
import jax
import jax.numpy as jnp
from jax.experimental import pallas as pl
from jax.experimental.pallas import tpu as pltpu


def bahdanau_kernel(dec_ref, enc_ref, wbT_ref, wcT_ref, par_ref, out_ref):
    """One batch tile per grid step.

    dec_ref : (Bb, 1, H)  decoder states for this batch tile
    enc_ref : (Bb, S, H)  encoder hidden states
    wbT_ref : (H, K)      W_b pre-transposed (canonical x @ W layout)
    wcT_ref : (H, K)      W_c pre-transposed
    par_ref : (2, K)      row 0 = b_b + b_c (combined bias), row 1 = W_a row
    out_ref : (Bb, 1, H)  context vectors
    """
    Bb, S, H = enc_ref.shape
    K = wbT_ref.shape[1]

    dec = dec_ref[...].reshape(Bb, H)            # native dtype, straight to MXU
    enc = enc_ref[...]                           # (Bb, S, H)
    params = par_ref[...].astype(jnp.float32)
    bias = params[0:1, :]                        # (1, K) == b_b + b_c
    wa = params[1:2, :]                          # (1, K)

    # Projections on the MXU: one fat (Bb*S, H) @ (H, K) matmul for the
    # encoder; f32 accumulation.
    proj_enc = jnp.dot(enc.reshape(Bb * S, H), wcT_ref[...],
                       preferred_element_type=jnp.float32)           # (Bb*S, K)
    proj_dec = jnp.dot(dec, wbT_ref[...],
                       preferred_element_type=jnp.float32)           # (Bb, K)

    # tanh(W_b(dec) + W_c(enc) + (b_b + b_c)); tanh on the EUP in f32.
    e = jnp.tanh(proj_enc.reshape(Bb, S, K) + proj_dec[:, None, :] + bias)

    # Scores: contract K (=16 lanes) against the W_a row. At this K a VPU
    # multiply + lane reduce beats forcing a lane-contracted MXU feed (which
    # would need a per-step transpose of e).  The module's scalar `ba` bias is
    # an exact no-op under the softmax over S and is omitted.
    score = jnp.sum(e * wa, axis=-1)             # (Bb, S) f32, S lane-dense

    # Numerically stable softmax over S, kept unnormalized.
    m = jnp.max(score, axis=-1, keepdims=True)   # (Bb, 1)
    p = jnp.exp(score - m)                       # (Bb, S)
    l = jnp.sum(p, axis=-1, keepdims=True)       # (Bb, 1)

    # Context: batched (Bb,1,S) @ (Bb,S,H) on the MXU, then exact normalize
    # (only Bb*H values; the divide never touches the (Bb, S) row).
    ctx = jnp.einsum('bqs,bsh->bqh', p.astype(enc.dtype)[:, None, :], enc,
                     preferred_element_type=jnp.float32)             # (Bb, 1, H)
    ctx = ctx / l[:, None, :]

    # One (Bb, 1, H) slab store per grid step (H < 128 is a masked vst either
    # way, but it is one store per tile rather than one per batch element).
    out_ref[...] = ctx.astype(out_ref.dtype)


def bahdanau_attention(decoder_state, encoder_hiddens, wa, ba, wb, bb, wc, bc,
                       *, block_b=None):
    """decoder_state: (B, 1, H); encoder_hiddens: (B, S, H). Returns (B, H) f32.

    `ba` is accepted for API parity with the PyTorch module but unused: a
    constant added to every score before the softmax over S cancels exactly.
    """
    del ba  # exact no-op under softmax
    B, S, H = encoder_hiddens.shape
    K = wb.shape[0]

    # Host-side (one-time) parameter prep:
    #   * W_b / W_c transposed to (H, K): the kernel contracts H on the RHS
    #     major axis (MXU-native), no per-step relayout.
    #   * b_b + b_c folded into one bias row; packed with the W_a row into a
    #     single (2, K) block -> one resident VMEM tile instead of three.
    wbT = jnp.asarray(wb).T                                   # (H, K)
    wcT = jnp.asarray(wc).T                                   # (H, K)
    params = jnp.stack(
        [jnp.asarray(bb) + jnp.asarray(bc), jnp.asarray(wa).reshape(K)],
        axis=0)                                               # (2, K)

    if block_b is None:
        # Batch tile: aim for block_b*S ~ 256 MXU rows (v6e/v7x fill target,
        # also covers v5e's 128).  When B*S is large this naturally yields
        # >= 2 grid steps so v7x's two TensorCores each take a "parallel"
        # slice; tiny batches (like the demo) run as one fat step, which is
        # strictly better on single-TC v5e/v6e (no per-step overhead to pay).
        block_b = max(1, min(B, 256 // max(S, 1)))
    block_b = max(1, min(block_b, B))
    grid = (pl.cdiv(B, block_b),)

    out = pl.pallas_call(
        bahdanau_kernel,
        out_shape=jax.ShapeDtypeStruct((B, 1, H), jnp.float32),
        grid=grid,
        in_specs=[
            pl.BlockSpec((block_b, 1, H), lambda b: (b, 0, 0)),   # decoder_state
            pl.BlockSpec((block_b, S, H), lambda b: (b, 0, 0)),   # encoder_hiddens
            pl.BlockSpec((H, K), lambda b: (0, 0)),               # W_b^T (resident)
            pl.BlockSpec((H, K), lambda b: (0, 0)),               # W_c^T (resident)
            pl.BlockSpec((2, K), lambda b: (0, 0)),               # [b_b+b_c ; W_a]
        ],
        out_specs=pl.BlockSpec((block_b, 1, H), lambda b: (b, 0, 0)),
        compiler_params=pltpu.CompilerParams(
            dimension_semantics=("parallel",)),
    )(decoder_state, encoder_hiddens, wbT, wcT, params)

    return out[:, 0, :]


def bahdanau_reference(decoder_state, encoder_hiddens, wa, ba, wb, bb, wc, bc):
    """Plain-JAX mirror of the full PyTorch forward (including ba), for checks."""
    proj_dec = decoder_state @ wb.T + bb                 # (B, 1, K)
    proj_enc = encoder_hiddens @ wc.T + bc               # (B, S, K)
    e = jnp.tanh(proj_dec + proj_enc)                    # (B, S, K)
    score = e @ wa.T + ba                                # (B, S, 1)
    alpha = jax.nn.softmax(score, axis=1)                # (B, S, 1)
    return jnp.sum(alpha * encoder_hiddens, axis=1)      # (B, H)


if __name__ == "__main__":
    B, S, H, K = 2, 8, 32, 16

    key = jax.random.PRNGKey(0)
    keys = jax.random.split(key, 8)

    # Deterministic synthetic parameters (shapes from the module's __init__).
    wa = jax.random.normal(keys[0], (1, K), jnp.float32) * 0.1   # W_a: Linear(k, 1)
    ba = jax.random.normal(keys[1], (1,), jnp.float32) * 0.1
    wb = jax.random.normal(keys[2], (K, H), jnp.float32) * 0.1   # W_b: Linear(h, k)
    bb = jax.random.normal(keys[3], (K,), jnp.float32) * 0.1
    wc = jax.random.normal(keys[4], (K, H), jnp.float32) * 0.1   # W_c: Linear(h, k)
    bc = jax.random.normal(keys[5], (K,), jnp.float32) * 0.1

    decoder_state = jax.random.normal(keys[6], (B, 1, H), jnp.float32)
    encoder_hiddens = jax.random.normal(keys[7], (B, S, H), jnp.float32)

    out = bahdanau_attention(decoder_state, encoder_hiddens, wa, ba, wb, bb, wc, bc)
    out = jax.block_until_ready(out)

    ref = bahdanau_reference(decoder_state, encoder_hiddens, wa, ba, wb, bb, wc, bc)
    if not jnp.allclose(out, ref, atol=5e-5, rtol=5e-5):
        raise AssertionError("Pallas kernel does not match JAX reference")

    print("KERNEL_OK")
</pallas_src>

<mosaic_0001>
module attributes {stable_mosaic.version = 11 : i64} {
  func.func @bahdanau_kernel(%arg0: i32, %arg1: memref<2x1x32xf32, #tpu.memory_space<vmem>>, %arg2: memref<2x8x32xf32, #tpu.memory_space<vmem>>, %arg3: memref<32x16xf32, #tpu.memory_space<vmem>>, %arg4: memref<32x16xf32, #tpu.memory_space<vmem>>, %arg5: memref<2x16xf32, #tpu.memory_space<vmem>>, %arg6: memref<2x1x32xf32, #tpu.memory_space<vmem>>) attributes {dimension_semantics = [#tpu.dimension_semantics<parallel>], iteration_bounds = array<i64: 1>, scalar_prefetch = 0 : i64, scratch_operands = 0 : i64, tpu.core_type = #tpu.core_type<tc>, window_params = [{transform_indices = @transform_0, window_bounds = array<i64: 2, 1, 32>}, {transform_indices = @transform_1, window_bounds = array<i64: 2, 8, 32>}, {pipeline_mode = #tpu.pipeline_mode<synchronous>, transform_indices = @transform_2, window_bounds = array<i64: 32, 16>}, {pipeline_mode = #tpu.pipeline_mode<synchronous>, transform_indices = @transform_3, window_bounds = array<i64: 32, 16>}, {pipeline_mode = #tpu.pipeline_mode<synchronous>, transform_indices = @transform_4, window_bounds = array<i64: 2, 16>}, {transform_indices = @transform_5, window_bounds = array<i64: 2, 1, 32>}]} {
    %c0 = arith.constant 0 : index
    %c0_0 = arith.constant 0 : index
    %c0_1 = arith.constant 0 : index
    %0 = vector.load %arg1[%c0, %c0_0, %c0_1] : memref<2x1x32xf32, #tpu.memory_space<vmem>>, vector<2x1x32xf32>
    %1 = vector.shape_cast %0 : vector<2x1x32xf32> to vector<2x32xf32>
    %c0_2 = arith.constant 0 : index
    %c0_3 = arith.constant 0 : index
    %c0_4 = arith.constant 0 : index
    %2 = vector.load %arg2[%c0_2, %c0_3, %c0_4] : memref<2x8x32xf32, #tpu.memory_space<vmem>>, vector<2x8x32xf32>
    %c0_5 = arith.constant 0 : index
    %c0_6 = arith.constant 0 : index
    %3 = vector.load %arg5[%c0_5, %c0_6] : memref<2x16xf32, #tpu.memory_space<vmem>>, vector<2x16xf32>
    %4 = vector.extract_strided_slice %3 {offsets = [0, 0], sizes = [1, 16], strides = [1, 1]} : vector<2x16xf32> to vector<1x16xf32>
    %5 = vector.extract_strided_slice %3 {offsets = [1, 0], sizes = [1, 16], strides = [1, 1]} : vector<2x16xf32> to vector<1x16xf32>
    %6 = vector.shape_cast %2 : vector<2x8x32xf32> to vector<16x32xf32>
    %c0_7 = arith.constant 0 : index
    %c0_8 = arith.constant 0 : index
    %7 = vector.load %arg4[%c0_7, %c0_8] : memref<32x16xf32, #tpu.memory_space<vmem>>, vector<32x16xf32>
    %cst = arith.constant dense<0.000000e+00> : vector<16x16xf32>
    %8 = tpu.matmul %6, %7, %cst {dimension_numbers = #tpu.dot_dimension_numbers<[1], [0], [0], [1], [0, 0, 1, 1], [], []>} : vector<16x32xf32>, vector<32x16xf32>, vector<16x16xf32> -> vector<16x16xf32>
    %c0_9 = arith.constant 0 : index
    %c0_10 = arith.constant 0 : index
    %9 = vector.load %arg3[%c0_9, %c0_10] : memref<32x16xf32, #tpu.memory_space<vmem>>, vector<32x16xf32>
    %cst_11 = arith.constant dense<0.000000e+00> : vector<2x16xf32>
    %10 = tpu.matmul %1, %9, %cst_11 {dimension_numbers = #tpu.dot_dimension_numbers<[1], [0], [0], [1], [0, 0, 1, 1], [], []>} : vector<2x32xf32>, vector<32x16xf32>, vector<2x16xf32> -> vector<2x16xf32>
    %11 = vector.shape_cast %8 : vector<16x16xf32> to vector<2x8x16xf32>
    %12 = vector.shape_cast %10 : vector<2x16xf32> to vector<2x1x16xf32>
    %13 = vector.broadcast %12 : vector<2x1x16xf32> to vector<2x8x16xf32>
    %14 = arith.addf %11, %13 : vector<2x8x16xf32>
    %15 = vector.shape_cast %4 : vector<1x16xf32> to vector<1x1x16xf32>
    %16 = vector.broadcast %15 : vector<1x1x16xf32> to vector<2x8x16xf32>
    %17 = arith.addf %14, %16 : vector<2x8x16xf32>
    %18 = math.tanh %17 : vector<2x8x16xf32>
    %19 = vector.shape_cast %5 : vector<1x16xf32> to vector<1x1x16xf32>
    %20 = vector.broadcast %19 : vector<1x1x16xf32> to vector<2x8x16xf32>
    %21 = arith.mulf %18, %20 : vector<2x8x16xf32>
    %cst_12 = arith.constant dense<0.000000e+00> : vector<2x8xf32>
    %22 = vector.multi_reduction <add>, %21, %cst_12 [2] : vector<2x8x16xf32> to vector<2x8xf32>
    %cst_13 = arith.constant dense<0xFF800000> : vector<2xf32>
    %23 = vector.multi_reduction <maximumf>, %22, %cst_13 [1] : vector<2x8xf32> to vector<2xf32>
    %24 = vector.shape_cast %23 : vector<2xf32> to vector<2x1xf32>
    %25 = vector.broadcast %24 : vector<2x1xf32> to vector<2x8xf32>
    %26 = arith.subf %22, %25 : vector<2x8xf32>
    %27 = math.exp %26 : vector<2x8xf32>
    %cst_14 = arith.constant dense<0.000000e+00> : vector<2xf32>
    %28 = vector.multi_reduction <add>, %27, %cst_14 [1] : vector<2x8xf32> to vector<2xf32>
    %29 = vector.shape_cast %28 : vector<2xf32> to vector<2x1xf32>
    %30 = vector.shape_cast %27 : vector<2x8xf32> to vector<2x1x8xf32>
    "tpu.trace_start"() <{level = 10 : i32, message = "bqs,bsh->bqh"}> : () -> ()
    %cst_15 = arith.constant dense<0.000000e+00> : vector<2x1x32xf32>
    %31 = tpu.matmul %30, %2, %cst_15 {dimension_numbers = #tpu.dot_dimension_numbers<[2], [1], [1], [2], [0, 0, 0, 1, 1, 2], [0], [0]>} : vector<2x1x8xf32>, vector<2x8x32xf32>, vector<2x1x32xf32> -> vector<2x1x32xf32>
    "tpu.trace_stop"() : () -> ()
    %32 = vector.shape_cast %29 : vector<2x1xf32> to vector<2x1x1xf32>
    %33 = vector.broadcast %32 : vector<2x1x1xf32> to vector<2x1x32xf32>
    %34 = arith.divf %31, %33 : vector<2x1x32xf32>
    %c0_16 = arith.constant 0 : index
    %c0_17 = arith.constant 0 : index
    %c0_18 = arith.constant 0 : index
    %35 = vector.load %arg6[%c0_16, %c0_17, %c0_18] : memref<2x1x32xf32, #tpu.memory_space<vmem>>, vector<2x1x32xf32>
    tpu.vector_store %arg6[%c0_16, %c0_17, %c0_18], %34 {strides = array<i32>} : memref<2x1x32xf32, #tpu.memory_space<vmem>>, vector<2x1x32xf32>,
    return
  }
  func.func @transform_0(%arg0: i32) -> (i32, i32, i32) {
    %c0_i32 = arith.constant 0 : i32
    %c0_i32_0 = arith.constant 0 : i32
    %c0_i32_1 = arith.constant 0 : i32
    return %arg0, %c0_i32, %c0_i32_0 : i32, i32, i32
  }
  func.func @transform_1(%arg0: i32) -> (i32, i32, i32) {
    %c0_i32 = arith.constant 0 : i32
    %c0_i32_0 = arith.constant 0 : i32
    %c0_i32_1 = arith.constant 0 : i32
    return %arg0, %c0_i32, %c0_i32_0 : i32, i32, i32
  }
  func.func @transform_2(%arg0: i32) -> (i32, i32) {
    %c0_i32 = arith.constant 0 : i32
    %c0_i32_0 = arith.constant 0 : i32
    %c0_i32_1 = arith.constant 0 : i32
    return %c0_i32, %c0_i32_0 : i32, i32
  }
  func.func @transform_3(%arg0: i32) -> (i32, i32) {
    %c0_i32 = arith.constant 0 : i32
    %c0_i32_0 = arith.constant 0 : i32
    %c0_i32_1 = arith.constant 0 : i32
    return %c0_i32, %c0_i32_0 : i32, i32
  }
  func.func @transform_4(%arg0: i32) -> (i32, i32) {
    %c0_i32 = arith.constant 0 : i32
    %c0_i32_0 = arith.constant 0 : i32
    %c0_i32_1 = arith.constant 0 : i32
    return %c0_i32, %c0_i32_0 : i32, i32
  }
  func.func @transform_5(%arg0: i32) -> (i32, i32, i32) {
    %c0_i32 = arith.constant 0 : i32
    %c0_i32_0 = arith.constant 0 : i32
    %c0_i32_1 = arith.constant 0 : i32
    return %arg0, %c0_i32, %c0_i32_0 : i32, i32, i32
  }
}

</mosaic_0001>

<llo_original>
// kernel: tpu_custom_call.1
$region0: #{tpu_custom_call.1}
  #allocation0 [shape = 'u32[]', space=smem, size = 0x4, offset = 0x4, fixed_abs, tag = 'smem constant byte address 0x4 - core index']
  #allocation1 [shape = 'u32[144,128]{1,0:T(1,128)}', space=vmem, size = 0x12000, scoped, tag = 'internal scratch']
  %s0 = inlined_call_operand.vmem [shape: f32[2,1,32], index: 0, kind: input, shape index: {}]
  %s1 = inlined_call_operand.vmem [shape: f32[2,8,32], index: 1, kind: input, shape index: {}]
  %s2 = inlined_call_operand.vmem [shape: f32[32,16], index: 2, kind: input, shape index: {}]
  %s3 = inlined_call_operand.vmem [shape: f32[32,16], index: 3, kind: input, shape index: {}]
  %s4 = inlined_call_operand.vmem [shape: f32[2,16], index: 4, kind: input, shape index: {}]
  %s5 = inlined_call_operand.hbm [shape: f32[2,1,32], index: 5, kind: output, shape index: {}]
  %s6 = sld [smem:[#allocation0]]
  $region30: #{tpu_custom_call.1} parent=0
    _
  %s8 = ssub.s32 1, %s6
  %s9 = scalar_select 0, %s8, %s6
  $region1: #{tpu_custom_call.1} parent=0
    #allocation2 [shape = 'u8[1024]{0}', space=vmem, size = 0x400, scoped, tag = 'output window, operand 0, single buffered']
    #allocation3 [shape = 's32[1]{0}', space=sflag, size = 0x4, scoped, tag = 'scoped memory for tpu_custom_call.1']
    %10 = vsyncpa [#allocation3], 0
    // Predicated region
    $region2: #{tpu_custom_call.1} parent=1 // pred_check
      _
    $region3: #{tpu_custom_call.1} parent=1 // pred_check_branch
      %12 = sbr.rel (0) target = $region5
    $region4: #{tpu_custom_call.1} parent=1 // pred_region
      _
    $region5: #{tpu_custom_call.1} parent=1 // pred_fallthru
      _
    // Predicated region
    $region6: #{tpu_custom_call.1} parent=1 // pred_check
      _
    $region7: #{tpu_custom_call.1} parent=1 // pred_check_branch
      %14 = sbr.rel (0) target = $region9
    $region8: #{tpu_custom_call.1} parent=1 // pred_region
      _
    $region9: #{tpu_custom_call.1} parent=1 // pred_fallthru
      _
    // Predicated region
    $region10: #{tpu_custom_call.1} parent=1 // pred_check
      _
    $region11: #{tpu_custom_call.1} parent=1 // pred_check_branch
      %16 = sbr.rel (0) target = $region13
    $region12: #{tpu_custom_call.1} parent=1 // pred_region
      _
    $region13: #{tpu_custom_call.1} parent=1 // pred_fallthru
      _
    // Predicated region
    $region14: #{tpu_custom_call.1} parent=1 // pred_check
      _
    $region15: #{tpu_custom_call.1} parent=1 // pred_check_branch
      %18 = sbr.rel (0) target = $region17
    $region16: #{tpu_custom_call.1} parent=1 // pred_region
      _
    $region17: #{tpu_custom_call.1} parent=1 // pred_fallthru
      _
    // Predicated region
    $region18: #{tpu_custom_call.1} parent=1 // pred_check
      _
    $region19: #{tpu_custom_call.1} parent=1 // pred_check_branch
      %20 = sbr.rel (0) target = $region21
    $region20: #{tpu_custom_call.1} parent=1 // pred_region
      _
    $region21: #{tpu_custom_call.1} parent=1 // pred_fallthru
      _
    %v21 = vld [vmem:[%s0] sm:$0x1]
    %v22 = vld [vmem:[%s0 + $0x1] sm:$0x1]
    %v23 = vld [vmem:[%s1] sm:$0xff]
    %v24 = vld [vmem:[%s1 + $0x8] sm:$0xff]
    %v25 = vld [vmem:[%s4] sm:$0x3]
    %v26 = vld [vmem:[%s3] sm:$0xff]
    %v27 = vld [vmem:[%s3 + $0x8] sm:$0xff]
    %v28 = vld [vmem:[%s3 + $0x10] sm:$0xff]
    %v29 = vld [vmem:[%s3 + $0x18] sm:$0xff]
    %vm30 = vcmask 261120
    %v32 = vsel %vm30, %v23, 0
    %v35 = vsel %vm30, %v24, 0
    %37 = vmatprep.subr.mxu0 0.0
    %38 = vmatpush1.msra.mxu0 %v26
    %39 = vmatprep.subr.mxu0 0.0
    %40 = vmatpush1.msra.mxu0 %v27
    %41 = vmatprep.subr.mxu0 0.0
    %42 = vmatpush1.msra.mxu0 %v28
    %43 = vmatprep.subr.mxu0 0.0
    %44 = vmatpush1.msra.mxu0 %v29
    %45 = vmatprep.subr.mxu0 0.0
    %46 = vmatpush1.msra.mxu0 0.0
    %47 = vmatprep.subr.mxu0 0.0
    %48 = vmatpush1.msra.mxu0 0.0
    %49 = vmatprep.subr.mxu0 0.0
    %50 = vmatpush1.msra.mxu0 0.0
    %51 = vmatprep.subr.mxu0 0.0
    %52 = vmatpush1.msra.mxu0 0.0
    %53 = vmatprep.subr.mxu0 0.0
    %54 = vmatpush1.msra.mxu0 0.0
    %55 = vmatprep.subr.mxu0 0.0
    %56 = vmatpush1.msra.mxu0 0.0
    %57 = vmatprep.subr.mxu0 0.0
    %58 = vmatpush1.msra.mxu0 0.0
    %59 = vmatprep.subr.mxu0 0.0
    %60 = vmatpush1.msra.mxu0 0.0
    %61 = vmatprep.subr.mxu0 0.0
    %62 = vmatpush1.msra.mxu0 0.0
    %63 = vmatprep.subr.mxu0 0.0
    %64 = vmatpush1.msra.mxu0 0.0
    %65 = vmatprep.subr.mxu0 0.0
    %66 = vmatpush1.msra.mxu0 0.0
    %67 = vmatprep.subr.mxu0 0.0
    %68 = vmatpush1.msra.mxu0 0.0
    %69 = vmatprep.subr.mxu0 0.0
    %70 = vmatpush1.msra.mxu0 0.0
    %71 = vmatprep.subr.mxu0 0.0
    %72 = vmatpush1.msra.mxu0 0.0
    %73 = vmatprep.subr.mxu0 0.0
    %74 = vmatpush1.msra.mxu0 0.0
    %75 = vmatprep.subr.mxu0 0.0
    %76 = vmatpush1.msra.mxu0 0.0
    %77 = vmatprep.subr.mxu0 0.0
    %78 = vmatpush1.msra.mxu0 0.0
    %79 = vmatprep.subr.mxu0 0.0
    %80 = vmatpush1.msra.mxu0 0.0
    %81 = vmatprep.subr.mxu0 0.0
    %82 = vmatpush1.msra.mxu0 0.0
    %83 = vmatprep.subr.mxu0 0.0
    %84 = vmatpush1.msra.mxu0 0.0
    %85 = vmatprep.subr.mxu0 0.0
    %86 = vmatpush1.msra.mxu0 0.0
    %87 = vmatprep.subr.mxu0 0.0
    %88 = vmatpush1.msra.mxu0 0.0
    %89 = vmatprep.subr.mxu0 0.0
    %90 = vmatpush1.msra.mxu0 0.0
    %91 = vmatprep.subr.mxu0 0.0
    %92 = vmatpush1.msra.mxu0 0.0
    %93 = vmatprep.subr.mxu0 0.0
    %94 = vmatpush1.msra.mxu0 0.0
    %95 = vmatprep.subr.mxu0 0.0
    %96 = vmatpush1.msra.mxu0 0.0
    %97 = vmatprep.subr.mxu0 0.0
    %98 = vmatpush1.msra.mxu0 0.0
    %99 = vmatprep.subr.mxu0 0.0
    %100 = vmatpush1.msra.mxu0 0.0
    %101 = vmatprep.mubr.f32.mxu0 0.0
    %102 = vmatmul.mubr.f32.gmra.mrb[0].mxu0 %v32
    %v103 = vpop.f32.mrb[0].mxu0
    %v104 = vadd.f32 0.0, %v103
    %v105 = vpop.f32.mrb[0].mxu0
    %106 = vmatprep.mubr.f32.mxu0 0.0
    %107 = vmatmul.mubr.f32.gmra.mrb[0].mxu0 %v35
    %v108 = vpop.f32.mrb[0].mxu0
    %v109 = vadd.f32 0.0, %v108
    %v110 = vpop.f32.mrb[0].mxu0
    %111 = vdwg.mxu0
    %v112 = vld [vmem:[%s2] sm:$0xff]
    %v113 = vld [vmem:[%s2 + $0x8] sm:$0xff]
    %v114 = vld [vmem:[%s2 + $0x10] sm:$0xff]
    %v115 = vld [vmem:[%s2 + $0x18] sm:$0xff]
    %v118 = vcombine.low %v21, %v22
    %v120 = vunpack.c.l.s4 1966171168
    %v121 = vunpack.c.0.s8 %v120
    %v122 = vlaneseq
    %v123 = vshrl.u32 %v122, 7
    %v124 = vsub.s32 %v121, %v123
    %v125 = vrot.slane %v118, %v124
    %v127 = vunpack.c.l.s4 1966171168
    %v128 = vunpack.c.0.s8 %v127
    %v129 = vlaneseq
    %v130 = vshrl.u32 %v129, 7
    %v131 = vsub.s32 %v128, %v130
    %v132 = vrot.slane %v125, %v131
    %v133 = vsel %vm30, %v132, 0
    %135 = vmatprep.subr.mxu0 0.0
    %136 = vmatpush1.msra.mxu0 %v112
    %137 = vmatprep.subr.mxu0 0.0
    %138 = vmatpush1.msra.mxu0 %v113
    %139 = vmatprep.subr.mxu0 0.0
    %140 = vmatpush1.msra.mxu0 %v114
    %141 = vmatprep.subr.mxu0 0.0
    %142 = vmatpush1.msra.mxu0 %v115
    %143 = vmatprep.subr.mxu0 0.0
    %144 = vmatpush1.msra.mxu0 0.0
    %145 = vmatprep.subr.mxu0 0.0
    %146 = vmatpush1.msra.mxu0 0.0
    %147 = vmatprep.subr.mxu0 0.0
    %148 = vmatpush1.msra.mxu0 0.0
    %149 = vmatprep.subr.mxu0 0.0
    %150 = vmatpush1.msra.mxu0 0.0
    %151 = vmatprep.subr.mxu0 0.0
    %152 = vmatpush1.msra.mxu0 0.0
    %153 = vmatprep.subr.mxu0 0.0
    %154 = vmatpush1.msra.mxu0 0.0
    %155 = vmatprep.subr.mxu0 0.0
    %156 = vmatpush1.msra.mxu0 0.0
    %157 = vmatprep.subr.mxu0 0.0
    %158 = vmatpush1.msra.mxu0 0.0
    %159 = vmatprep.subr.mxu0 0.0
    %160 = vmatpush1.msra.mxu0 0.0
    %161 = vmatprep.subr.mxu0 0.0
    %162 = vmatpush1.msra.mxu0 0.0
    %163 = vmatprep.subr.mxu0 0.0
    %164 = vmatpush1.msra.mxu0 0.0
    %165 = vmatprep.subr.mxu0 0.0
    %166 = vmatpush1.msra.mxu0 0.0
    %167 = vmatprep.subr.mxu0 0.0
    %168 = vmatpush1.msra.mxu0 0.0
    %169 = vmatprep.subr.mxu0 0.0
    %170 = vmatpush1.msra.mxu0 0.0
    %171 = vmatprep.subr.mxu0 0.0
    %172 = vmatpush1.msra.mxu0 0.0
    %173 = vmatprep.subr.mxu0 0.0
    %174 = vmatpush1.msra.mxu0 0.0
    %175 = vmatprep.subr.mxu0 0.0
    %176 = vmatpush1.msra.mxu0 0.0
    %177 = vmatprep.subr.mxu0 0.0
    %178 = vmatpush1.msra.mxu0 0.0
    %179 = vmatprep.subr.mxu0 0.0
    %180 = vmatpush1.msra.mxu0 0.0
    %181 = vmatprep.subr.mxu0 0.0
    %182 = vmatpush1.msra.mxu0 0.0
    %183 = vmatprep.subr.mxu0 0.0
    %184 = vmatpush1.msra.mxu0 0.0
    %185 = vmatprep.subr.mxu0 0.0
    %186 = vmatpush1.msra.mxu0 0.0
    %187 = vmatprep.subr.mxu0 0.0
    %188 = vmatpush1.msra.mxu0 0.0
    %189 = vmatprep.subr.mxu0 0.0
    %190 = vmatpush1.msra.mxu0 0.0
    %191 = vmatprep.subr.mxu0 0.0
    %192 = vmatpush1.msra.mxu0 0.0
    %193 = vmatprep.subr.mxu0 0.0
    %194 = vmatpush1.msra.mxu0 0.0
    %195 = vmatprep.subr.mxu0 0.0
    %196 = vmatpush1.msra.mxu0 0.0
    %197 = vmatprep.subr.mxu0 0.0
    %198 = vmatpush1.msra.mxu0 0.0
    %199 = vmatprep.mubr.f32.mxu0 0.0
    %200 = vmatmul.mubr.f32.gmra.mrb[0].mxu0 %v133
    %v201 = vpop.f32.mrb[0].mxu0
    %v202 = vadd.f32 0.0, %v201
    %v203 = vpop.f32.mrb[0].mxu0
    %204 = vdwg.mxu0
    %v207 = vunpack.c.l.s4 1966171168
    %v208 = vunpack.c.0.s8 %v207
    %v209 = vlaneseq
    %v210 = vshrl.u32 %v209, 7
    %v211 = vsub.s32 %v208, %v210
    %v212 = vrot.slane %v202, %v211
    %v213 = vcombine.high %v212, %v212
    %v215 = vunpack.c.l.s4 1966171168
    %v216 = vunpack.c.0.s8 %v215
    %v217 = vlaneseq
    %v218 = vshrl.u32 %v217, 7
    %v219 = vsub.s32 %v216, %v218
    %v220 = vrot.slane %v212, %v219
    %v222 = vunpack.c.l.s4 1966171168
    %v223 = vunpack.c.0.s8 %v222
    %v224 = vlaneseq
    %v225 = vshrl.u32 %v224, 7
    %v226 = vsub.s32 %v223, %v225
    %v227 = vrot.slane %v213, %v226
    %v228 = vlaneseq
    %v229 = vshrl.u32 %v228, 7
    %v230 = vsub.s32 0, %v229
    %v231 = vrot.slane %v220, %v230
    %v232 = vlaneseq
    %v233 = vshrl.u32 %v232, 7
    %v234 = vsub.s32 0, %v233
    %v235 = vrot.slane %v227, %v234
    %v238 = vadd.f32 %v104, %v231
    %v239 = vadd.f32 %v109, %v235
    %v240 = vlaneseq
    %v241 = vshrl.u32 %v240, 7
    %v242 = vsub.s32 0, %v241
    %v243 = vrot.slane %v25, %v242
    %v244 = vadd.f32 %v238, %v243
    %v245 = vadd.f32 %v239, %v243
    %v246 = vtanh.pop %v244
    %v247 = vtanh.pop %v245
    %v248 = vlaneseq
    %v249 = vshrl.u32 %v248, 7
    %v250 = vsub.s32 1, %v249
    %v251 = vrot.slane %v25, %v250
    %v252 = vmul.f32 %v246, %v251
    %v253 = vmul.f32 %v247, %v251
    %vm254 = vcmask 130048
    %v255 = vsel %vm254, %v252, 0.0
    %256 = vadd.xlane.f32.xlu0 %v255
    %v257 = vpop.xlane.xlu0 %256
    %v258 = vsel %vm254, %v253, 0.0
    %259 = vadd.xlane.f32.xlu0 %v258
    %v260 = vpop.xlane.xlu0 %259
    %v263 = vlaneseq
    %v264 = vand.u32 %v263, 127
    %v265 = vlaneseq
    %v266 = vshrl.u32 %v265, 7
    %v267 = vsub.s32 %v264, %v266
    %v268 = vrot.slane %v257, %v267
    %v269 = vlaneseq
    %v270 = vshrl.u32 %v269, 7
    %v271 = vsub.s32 %v264, %v270
    %v272 = vrot.slane %v260, %v271
    %vm273 = vcmask 1041409
    %v274 = vsel %vm273, %v272, %v268
    %vm276 = vcmask 58368
    %v277 = vsel %vm276, %v274, -inf
    %278 = vmax.xlane.f32.xlu0 %v277
    %v279 = vpop.xlane.xlu0 %278
    %v281 = vlaneseq
    %v282 = vshrl.u32 %v281, 7
    %v283 = vsub.s32 0, %v282
    %v284 = vrot.slane %v279, %v283
    %v285 = vlaneseq
    %v286 = vshrl.u32 %v285, 7
    %v287 = vsub.s32 1, %v286
    %v288 = vrot.slane %v279, %v287
    %v291 = vsub.f32 %v257, %v284
    %v292 = vsub.f32 %v260, %v288
    %v293 = vmul.f32 %v291, 1.442695
    %v294 = vpow.pop %v293
    %v295 = vmul.f32 %v292, 1.442695
    %v296 = vpow.pop %v295
    %299 = vset.pattern.permute.xlu0 0
    %300 = vperm.xlu0 %299, %v294
    %v301 = vpop.permute.xlu0 %300
    %302 = vset.pattern.permute.xlu0 0
    %303 = vperm.xlu0 %302, %v296
    %v304 = vpop.permute.xlu0 %303
    %v305 = vlaneseq
    %v306 = vshrl.u32 %v305, 7
    %v307 = vsub.s32 %v264, %v306
    %v308 = vrot.slane %v301, %v307
    %v309 = vlaneseq
    %v310 = vshrl.u32 %v309, 7
    %v311 = vsub.s32 %v264, %v310
    %v312 = vrot.slane %v304, %v311
    %v313 = vsel %vm273, %v312, %v308
    %v315 = vsel %vm276, %v313, 0.0
    %316 = vadd.xlane.f32.xlu0 %v315
    %v317 = vpop.xlane.xlu0 %316
    %vm318 = vcmask 64512
    %v319 = vsel %vm318, %v308, 0
    %321 = vmatprep.subr.mxu0 0.0
    %322 = vmatpush1.msra.mxu0 %v23
    %323 = vmatprep.subr.mxu0 0.0
    %324 = vmatpush1.msra.mxu0 0.0
    %325 = vmatprep.subr.mxu0 0.0
    %326 = vmatpush1.msra.mxu0 0.0
    %327 = vmatprep.subr.mxu0 0.0
    %328 = vmatpush1.msra.mxu0 0.0
    %329 = vmatprep.subr.mxu0 0.0
    %330 = vmatpush1.msra.mxu0 0.0
    %331 = vmatprep.subr.mxu0 0.0
    %332 = vmatpush1.msra.mxu0 0.0
    %333 = vmatprep.subr.mxu0 0.0
    %334 = vmatpush1.msra.mxu0 0.0
    %335 = vmatprep.subr.mxu0 0.0
    %336 = vmatpush1.msra.mxu0 0.0
    %337 = vmatprep.subr.mxu0 0.0
    %338 = vmatpush1.msra.mxu0 0.0
    %339 = vmatprep.subr.mxu0 0.0
    %340 = vmatpush1.msra.mxu0 0.0
    %341 = vmatprep.subr.mxu0 0.0
    %342 = vmatpush1.msra.mxu0 0.0
    %343 = vmatprep.subr.mxu0 0.0
    %344 = vmatpush1.msra.mxu0 0.0
    %345 = vmatprep.subr.mxu0 0.0
    %346 = vmatpush1.msra.mxu0 0.0
    %347 = vmatprep.subr.mxu0 0.0
    %348 = vmatpush1.msra.mxu0 0.0
    %349 = vmatprep.subr.mxu0 0.0
    %350 = vmatpush1.msra.mxu0 0.0
    %351 = vmatprep.subr.mxu0 0.0
    %352 = vmatpush1.msra.mxu0 0.0
    %353 = vmatprep.subr.mxu0 0.0
    %354 = vmatpush1.msra.mxu0 0.0
    %355 = vmatprep.subr.mxu0 0.0
    %356 = vmatpush1.msra.mxu0 0.0
    %357 = vmatprep.subr.mxu0 0.0
    %358 = vmatpush1.msra.mxu0 0.0
    %359 = vmatprep.subr.mxu0 0.0
    %360 = vmatpush1.msra.mxu0 0.0
    %361 = vmatprep.subr.mxu0 0.0
    %362 = vmatpush1.msra.mxu0 0.0
    %363 = vmatprep.subr.mxu0 0.0
    %364 = vmatpush1.msra.mxu0 0.0
    %365 = vmatprep.subr.mxu0 0.0
    %366 = vmatpush1.msra.mxu0 0.0
    %367 = vmatprep.subr.mxu0 0.0
    %368 = vmatpush1.msra.mxu0 0.0
    %369 = vmatprep.subr.mxu0 0.0
    %370 = vmatpush1.msra.mxu0 0.0
    %371 = vmatprep.subr.mxu0 0.0
    %372 = vmatpush1.msra.mxu0 0.0
    %373 = vmatprep.subr.mxu0 0.0
    %374 = vmatpush1.msra.mxu0 0.0
    %375 = vmatprep.subr.mxu0 0.0
    %376 = vmatpush1.msra.mxu0 0.0
    %377 = vmatprep.subr.mxu0 0.0
    %378 = vmatpush1.msra.mxu0 0.0
    %379 = vmatprep.subr.mxu0 0.0
    %380 = vmatpush1.msra.mxu0 0.0
    %381 = vmatprep.subr.mxu0 0.0
    %382 = vmatpush1.msra.mxu0 0.0
    %383 = vmatprep.subr.mxu0 0.0
    %384 = vmatpush1.msra.mxu0 0.0
    %385 = vmatprep.mubr.f32.mxu0 0.0
    %386 = vmatmul.mubr.f32.gmra.mrb[0].mxu0 %v319
    %v387 = vpop.f32.mrb[0].mxu0
    %v388 = vadd.f32 0.0, %v387
    %v389 = vpop.f32.mrb[0].mxu0
    %390 = vdwg.mxu0
    %v391 = vsel %vm318, %v312, 0
    %393 = vmatprep.subr.mxu0 0.0
    %394 = vmatpush1.msra.mxu0 %v24
    %395 = vmatprep.subr.mxu0 0.0
    %396 = vmatpush1.msra.mxu0 0.0
    %397 = vmatprep.subr.mxu0 0.0
    %398 = vmatpush1.msra.mxu0 0.0
    %399 = vmatprep.subr.mxu0 0.0
    %400 = vmatpush1.msra.mxu0 0.0
    %401 = vmatprep.subr.mxu0 0.0
    %402 = vmatpush1.msra.mxu0 0.0
    %403 = vmatprep.subr.mxu0 0.0
    %404 = vmatpush1.msra.mxu0 0.0
    %405 = vmatprep.subr.mxu0 0.0
    %406 = vmatpush1.msra.mxu0 0.0
    %407 = vmatprep.subr.mxu0 0.0
    %408 = vmatpush1.msra.mxu0 0.0
    %409 = vmatprep.subr.mxu0 0.0
    %410 = vmatpush1.msra.mxu0 0.0
    %411 = vmatprep.subr.mxu0 0.0
    %412 = vmatpush1.msra.mxu0 0.0
    %413 = vmatprep.subr.mxu0 0.0
    %414 = vmatpush1.msra.mxu0 0.0
    %415 = vmatprep.subr.mxu0 0.0
    %416 = vmatpush1.msra.mxu0 0.0
    %417 = vmatprep.subr.mxu0 0.0
    %418 = vmatpush1.msra.mxu0 0.0
    %419 = vmatprep.subr.mxu0 0.0
    %420 = vmatpush1.msra.mxu0 0.0
    %421 = vmatprep.subr.mxu0 0.0
    %422 = vmatpush1.msra.mxu0 0.0
    %423 = vmatprep.subr.mxu0 0.0
    %424 = vmatpush1.msra.mxu0 0.0
    %425 = vmatprep.subr.mxu0 0.0
    %426 = vmatpush1.msra.mxu0 0.0
    %427 = vmatprep.subr.mxu0 0.0
    %428 = vmatpush1.msra.mxu0 0.0
    %429 = vmatprep.subr.mxu0 0.0
    %430 = vmatpush1.msra.mxu0 0.0
    %431 = vmatprep.subr.mxu0 0.0
    %432 = vmatpush1.msra.mxu0 0.0
    %433 = vmatprep.subr.mxu0 0.0
    %434 = vmatpush1.msra.mxu0 0.0
    %435 = vmatprep.subr.mxu0 0.0
    %436 = vmatpush1.msra.mxu0 0.0
    %437 = vmatprep.subr.mxu0 0.0
    %438 = vmatpush1.msra.mxu0 0.0
    %439 = vmatprep.subr.mxu0 0.0
    %440 = vmatpush1.msra.mxu0 0.0
    %441 = vmatprep.subr.mxu0 0.0
    %442 = vmatpush1.msra.mxu0 0.0
    %443 = vmatprep.subr.mxu0 0.0
    %444 = vmatpush1.msra.mxu0 0.0
    %445 = vmatprep.subr.mxu0 0.0
    %446 = vmatpush1.msra.mxu0 0.0
    %447 = vmatprep.subr.mxu0 0.0
    %448 = vmatpush1.msra.mxu0 0.0
    %449 = vmatprep.subr.mxu0 0.0
    %450 = vmatpush1.msra.mxu0 0.0
    %451 = vmatprep.subr.mxu0 0.0
    %452 = vmatpush1.msra.mxu0 0.0
    %453 = vmatprep.subr.mxu0 0.0
    %454 = vmatpush1.msra.mxu0 0.0
    %455 = vmatprep.subr.mxu0 0.0
    %456 = vmatpush1.msra.mxu0 0.0
    %457 = vmatprep.mubr.f32.mxu0 0.0
    %458 = vmatmul.mubr.f32.gmra.mrb[0].mxu0 %v391
    %v459 = vpop.f32.mrb[0].mxu0
    %v460 = vadd.f32 0.0, %v459
    %v461 = vpop.f32.mrb[0].mxu0
    %462 = vdwg.mxu0
    %v464 = vlaneseq
    %v465 = vshrl.u32 %v464, 7
    %v466 = vsub.s32 0, %v465
    %v467 = vrot.slane %v317, %v466
    %v468 = vlaneseq
    %v469 = vshrl.u32 %v468, 7
    %v470 = vsub.s32 1, %v469
    %v471 = vrot.slane %v317, %v470
    %v474 = vrcp.pop %v467
    %v475 = vmul.f32 %v388, %v474
    %v476 = vrcp.pop %v471
    %v477 = vmul.f32 %v460, %v476
    %vm478 = vcmask 253952
    %479 = vst.msk [vmem:[#allocation2] sm:$0x1] %vm478, %v475
    %480 = vst.msk [vmem:[#allocation2 + $0x1] sm:$0x1] %vm478, %v477
    // Predicated region
    $region22: #{tpu_custom_call.1} parent=1 // pred_check
      _
    $region23: #{tpu_custom_call.1} parent=1 // pred_check_branch
      %482 = sbr.rel (0) target = $region25
    $region24: #{tpu_custom_call.1} parent=1 // pred_region
      %s484 = ssub.s32 32, 32
      %485 = vsyncadd [#allocation3], %s484
      %s486 = sshll.u32 [#allocation2], 4
      %s487 = int_to_ptr.vmem [resolvable:$true] %s486
      %492 = dma.vmem_to_hbm [thread:$0]  %s487, 32, %s5, [#allocation3], 16, 16, 1
    $region25: #{tpu_custom_call.1} parent=1 // pred_fallthru
      _
    // Predicated region
    $region26: #{tpu_custom_call.1} parent=1 // pred_check
      _
    $region27: #{tpu_custom_call.1} parent=1 // pred_check_branch
      %494 = sbr.rel (0) target = $region29
    $region28: #{tpu_custom_call.1} parent=1 // pred_region
      %495 = dma.done [#allocation3], 32
    $region29: #{tpu_custom_call.1} parent=1 // pred_fallthru
      _
    %496 = vsyncpa [#allocation3], 1

</llo_original>
